<compile_context>
chip_gen: v7x
topology: tpu7x:2x2x1
jax: 0.10.0
libtpu: 0.0.40
codegen_flags: <defaults>
</compile_context>

<pallas_src>
import jax
import jax.numpy as jnp
from jax.experimental import pallas as pl
from jax.experimental.pallas import tpu as pltpu


def linear_vpu_kernel(x_ref, w_ref, b_ref, o_ref):
    """out[:, j] = sum_k x[:, k] * w[j*in_f + k] + b[j]  — unrolled on the VPU.

    x_ref : (B, in_f)        f32, VMEM
    w_ref : (out_f * in_f,)  f32, SMEM  (flattened PyTorch (out_f, in_f) layout)
    b_ref : (out_f,)         f32, SMEM
    o_ref : (B, out_f)       f32, VMEM
    """
    in_f = x_ref.shape[1]
    out_f = o_ref.shape[1]

    x = x_ref[...]                                   # single load of the whole tile

    cols = []
    for j in range(out_f):                           # static unroll: 10 FMAs total
        acc = x[:, 0:1] * w_ref[j * in_f + 0]        # (B,1) * SMEM scalar -> VPU
        for k in range(1, in_f):
            acc = acc + x[:, k:k + 1] * w_ref[j * in_f + k]
        cols.append(acc + b_ref[j])                  # SMEM scalar bias broadcast

    # One store of the full (B, out_f) tile.
    o_ref[...] = jnp.concatenate(cols, axis=-1).astype(o_ref.dtype)


def linear_forward(x, weight, bias):
    """Equivalent of Model.forward: nn.Linear(input_size, output_size)(x).

    x:      (B, in_features) float32
    weight: (out_features, in_features) float32  (PyTorch layout, NOT transposed)
    bias:   (out_features,) float32
    """
    B, in_f = x.shape
    out_f, in_f_w = weight.shape
    assert in_f == in_f_w, "weight / input feature mismatch"

    elem_bytes = jnp.dtype(x.dtype).itemsize
    cost = pl.CostEstimate(
        flops=2 * B * in_f * out_f,
        transcendentals=0,
        bytes_accessed=(x.size + weight.size + bias.size + B * out_f) * elem_bytes,
    )

    w_flat = weight.reshape(out_f * in_f)            # flat scalars for SMEM

    return pl.pallas_call(
        linear_vpu_kernel,
        out_shape=jax.ShapeDtypeStruct((B, out_f), x.dtype),
        in_specs=[
            pl.BlockSpec(memory_space=pltpu.MemorySpace.VMEM),   # x
            pl.BlockSpec(memory_space=pltpu.MemorySpace.SMEM),   # weight (flat)
            pl.BlockSpec(memory_space=pltpu.MemorySpace.SMEM),   # bias
        ],
        out_specs=pl.BlockSpec(memory_space=pltpu.MemorySpace.VMEM),
        cost_estimate=cost,
    )(x, w_flat, bias)


if __name__ == "__main__":
    input_size = 5
    output_size = 2
    batch = 8

    key = jax.random.PRNGKey(0)
    kx, kw, kb = jax.random.split(key, 3)

    # Deterministic parameter init, mimicking nn.Linear's U(-1/sqrt(in), 1/sqrt(in)).
    bound = 1.0 / (input_size ** 0.5)
    weight = jax.random.uniform(kw, (output_size, input_size),
                                minval=-bound, maxval=bound, dtype=jnp.float32)
    bias = jax.random.uniform(kb, (output_size,),
                              minval=-bound, maxval=bound, dtype=jnp.float32)

    x = jax.random.normal(kx, (batch, input_size), dtype=jnp.float32)

    out = jax.jit(linear_forward)(x, weight, bias)
    out = jax.block_until_ready(out)

    # Cross-check against plain-JAX reference of the same math.
    ref = x @ weight.T + bias
    assert out.shape == (batch, output_size)
    assert jnp.allclose(out, ref, atol=1e-5, rtol=1e-5)

    print("KERNEL_OK")
</pallas_src>

<mosaic_0001>
module attributes {stable_mosaic.version = 11 : i64} {
  func.func @linear_vpu_kernel(%arg0: memref<8x5xf32, #tpu.memory_space<vmem>>, %arg1: memref<10xf32, #tpu.memory_space<smem>>, %arg2: memref<2xf32, #tpu.memory_space<smem>>, %arg3: memref<8x2xf32, #tpu.memory_space<vmem>>) attributes {dimension_semantics = [], scalar_prefetch = 0 : i64, scratch_operands = 0 : i64, tpu.core_type = #tpu.core_type<tc>} {
    %c0 = arith.constant 0 : index
    %c0_0 = arith.constant 0 : index
    %0 = vector.load %arg0[%c0, %c0_0] : memref<8x5xf32, #tpu.memory_space<vmem>>, vector<8x5xf32>
    %1 = vector.extract_strided_slice %0 {offsets = [0, 0], sizes = [8, 1], strides = [1, 1]} : vector<8x5xf32> to vector<8x1xf32>
    %c0_1 = arith.constant 0 : index
    %2 = memref.load %arg1[%c0_1] : memref<10xf32, #tpu.memory_space<smem>>
    %3 = vector.broadcast %2 : f32 to vector<8x1xf32>
    %4 = arith.mulf %1, %3 : vector<8x1xf32>
    %5 = vector.extract_strided_slice %0 {offsets = [0, 1], sizes = [8, 1], strides = [1, 1]} : vector<8x5xf32> to vector<8x1xf32>
    %c1 = arith.constant 1 : index
    %6 = memref.load %arg1[%c1] : memref<10xf32, #tpu.memory_space<smem>>
    %7 = vector.broadcast %6 : f32 to vector<8x1xf32>
    %8 = arith.mulf %5, %7 : vector<8x1xf32>
    %9 = arith.addf %4, %8 : vector<8x1xf32>
    %10 = vector.extract_strided_slice %0 {offsets = [0, 2], sizes = [8, 1], strides = [1, 1]} : vector<8x5xf32> to vector<8x1xf32>
    %c2 = arith.constant 2 : index
    %11 = memref.load %arg1[%c2] : memref<10xf32, #tpu.memory_space<smem>>
    %12 = vector.broadcast %11 : f32 to vector<8x1xf32>
    %13 = arith.mulf %10, %12 : vector<8x1xf32>
    %14 = arith.addf %9, %13 : vector<8x1xf32>
    %15 = vector.extract_strided_slice %0 {offsets = [0, 3], sizes = [8, 1], strides = [1, 1]} : vector<8x5xf32> to vector<8x1xf32>
    %c3 = arith.constant 3 : index
    %16 = memref.load %arg1[%c3] : memref<10xf32, #tpu.memory_space<smem>>
    %17 = vector.broadcast %16 : f32 to vector<8x1xf32>
    %18 = arith.mulf %15, %17 : vector<8x1xf32>
    %19 = arith.addf %14, %18 : vector<8x1xf32>
    %20 = vector.extract_strided_slice %0 {offsets = [0, 4], sizes = [8, 1], strides = [1, 1]} : vector<8x5xf32> to vector<8x1xf32>
    %c4 = arith.constant 4 : index
    %21 = memref.load %arg1[%c4] : memref<10xf32, #tpu.memory_space<smem>>
    %22 = vector.broadcast %21 : f32 to vector<8x1xf32>
    %23 = arith.mulf %20, %22 : vector<8x1xf32>
    %24 = arith.addf %19, %23 : vector<8x1xf32>
    %c0_2 = arith.constant 0 : index
    %25 = memref.load %arg2[%c0_2] : memref<2xf32, #tpu.memory_space<smem>>
    %26 = vector.broadcast %25 : f32 to vector<8x1xf32>
    %27 = arith.addf %24, %26 : vector<8x1xf32>
    %28 = vector.extract_strided_slice %0 {offsets = [0, 0], sizes = [8, 1], strides = [1, 1]} : vector<8x5xf32> to vector<8x1xf32>
    %c5 = arith.constant 5 : index
    %29 = memref.load %arg1[%c5] : memref<10xf32, #tpu.memory_space<smem>>
    %30 = vector.broadcast %29 : f32 to vector<8x1xf32>
    %31 = arith.mulf %28, %30 : vector<8x1xf32>
    %32 = vector.extract_strided_slice %0 {offsets = [0, 1], sizes = [8, 1], strides = [1, 1]} : vector<8x5xf32> to vector<8x1xf32>
    %c6 = arith.constant 6 : index
    %33 = memref.load %arg1[%c6] : memref<10xf32, #tpu.memory_space<smem>>
    %34 = vector.broadcast %33 : f32 to vector<8x1xf32>
    %35 = arith.mulf %32, %34 : vector<8x1xf32>
    %36 = arith.addf %31, %35 : vector<8x1xf32>
    %37 = vector.extract_strided_slice %0 {offsets = [0, 2], sizes = [8, 1], strides = [1, 1]} : vector<8x5xf32> to vector<8x1xf32>
    %c7 = arith.constant 7 : index
    %38 = memref.load %arg1[%c7] : memref<10xf32, #tpu.memory_space<smem>>
    %39 = vector.broadcast %38 : f32 to vector<8x1xf32>
    %40 = arith.mulf %37, %39 : vector<8x1xf32>
    %41 = arith.addf %36, %40 : vector<8x1xf32>
    %42 = vector.extract_strided_slice %0 {offsets = [0, 3], sizes = [8, 1], strides = [1, 1]} : vector<8x5xf32> to vector<8x1xf32>
    %c8 = arith.constant 8 : index
    %43 = memref.load %arg1[%c8] : memref<10xf32, #tpu.memory_space<smem>>
    %44 = vector.broadcast %43 : f32 to vector<8x1xf32>
    %45 = arith.mulf %42, %44 : vector<8x1xf32>
    %46 = arith.addf %41, %45 : vector<8x1xf32>
    %47 = vector.extract_strided_slice %0 {offsets = [0, 4], sizes = [8, 1], strides = [1, 1]} : vector<8x5xf32> to vector<8x1xf32>
    %c9 = arith.constant 9 : index
    %48 = memref.load %arg1[%c9] : memref<10xf32, #tpu.memory_space<smem>>
    %49 = vector.broadcast %48 : f32 to vector<8x1xf32>
    %50 = arith.mulf %47, %49 : vector<8x1xf32>
    %51 = arith.addf %46, %50 : vector<8x1xf32>
    %c1_3 = arith.constant 1 : index
    %52 = memref.load %arg2[%c1_3] : memref<2xf32, #tpu.memory_space<smem>>
    %53 = vector.broadcast %52 : f32 to vector<8x1xf32>
    %54 = arith.addf %51, %53 : vector<8x1xf32>
    %55 = tpu.concatenate %27, %54 in 1 : vector<8x1xf32>, vector<8x1xf32> -> vector<8x2xf32>
    %c0_4 = arith.constant 0 : index
    %c0_5 = arith.constant 0 : index
    %56 = vector.load %arg3[%c0_4, %c0_5] : memref<8x2xf32, #tpu.memory_space<vmem>>, vector<8x2xf32>
    tpu.vector_store %arg3[%c0_4, %c0_5], %55 {strides = array<i32>} : memref<8x2xf32, #tpu.memory_space<vmem>>, vector<8x2xf32>,
    return
  }
}

</mosaic_0001>

<llo_original>
// kernel: linear_forward.1
$region0: #{linear_forward.1}
  #allocation0 [shape = 'u32[]', space=smem, size = 0x4, offset = 0x4, fixed_abs, tag = 'smem constant byte address 0x4 - core index']
  #allocation1 [shape = 'u32[144,128]{1,0:T(1,128)}', space=vmem, size = 0x12000, scoped, tag = 'internal scratch']
  %s0 = inlined_call_operand.hbm [shape: f32[8,5], index: 0, kind: input, shape index: {}]
  %s1 = inlined_call_operand.vmem [shape: f32[10], index: 1, kind: input, shape index: {}]
  %s2 = inlined_call_operand.vmem [shape: f32[2], index: 2, kind: input, shape index: {}]
  %s3 = inlined_call_operand.vmem [shape: f32[8,2], index: 3, kind: output, shape index: {}]
  %s4 = sld [smem:[#allocation0]]
  $region34: #{linear_forward.1} parent=0
    _
  %s6 = ssub.s32 1, %s4
  %s7 = scalar_select 0, %s6, %s4
  $region1: #{linear_forward.1} parent=0
    #allocation2 [shape = 'u8[4096]{0}', space=vmem, size = 0x1000, scoped, tag = 'input window, operand 0, single buffered']
    #allocation3 [shape = 's32[1]{0}', space=sflag, size = 0x4, scoped, tag = 'scoped memory for linear_forward.1']
    #allocation4 [shape = 's32[1]{0}', space=sflag, size = 0x4, scoped, tag = 'scoped memory for linear_forward.1']
    #allocation5 [shape = 'u8[512]{0}', space=smem, size = 0x200, scoped, tag = 'input window, operand 1, single buffered']
    #allocation6 [shape = 'u8[512]{0}', space=smem, size = 0x200, scoped, tag = 'input window, operand 2, single buffered']
    #allocation7 [shape = 's32[1]{0}', space=sflag, size = 0x4, scoped, tag = 'scoped memory for linear_forward.1']
    %8 = vsyncpa [#allocation3], 0
    %9 = vsyncpa [#allocation4], 0
    %10 = vsyncpa [#allocation7], 0
    // Predicated region
    $region2: #{linear_forward.1} parent=1 // pred_check
      _
    $region3: #{linear_forward.1} parent=1 // pred_check_branch
      %12 = sbr.rel (0) target = $region5
    $region4: #{linear_forward.1} parent=1 // pred_region
      %s14 = ssub.s32 128, 128
      %15 = vsyncadd [#allocation3], %s14
      %s17 = sshll.u32 [#allocation2], 4
      %s18 = int_to_ptr.vmem [resolvable:$true] %s17
      %20 = dma.hbm_to_vmem [thread:$0]  %s0, 128, %s18, [#allocation3]
    $region5: #{linear_forward.1} parent=1 // pred_fallthru
      _
    // Predicated region
    $region6: #{linear_forward.1} parent=1 // pred_check
      _
    $region7: #{linear_forward.1} parent=1 // pred_check_branch
      %22 = sbr.rel (0) target = $region9
    $region8: #{linear_forward.1} parent=1 // pred_region
      %s24 = ssub.s32 16, 16
      %25 = vsyncadd [#allocation4], %s24
      %s27 = sshll.u32 %s1, 4
      %s28 = int_to_ptr.vmem [resolvable:$true] %s27
      %30 = dma.vmem_to_smem %s28, 16, [#allocation5], [#allocation4]
    $region9: #{linear_forward.1} parent=1 // pred_fallthru
      _
    // Predicated region
    $region10: #{linear_forward.1} parent=1 // pred_check
      _
    $region11: #{linear_forward.1} parent=1 // pred_check_branch
      %32 = sbr.rel (0) target = $region13
    $region12: #{linear_forward.1} parent=1 // pred_region
      %s34 = ssub.s32 16, 16
      %35 = vsyncadd [#allocation7], %s34
      %s37 = sshll.u32 %s2, 4
      %s38 = int_to_ptr.vmem [resolvable:$true] %s37
      %40 = dma.vmem_to_smem %s38, 16, [#allocation6], [#allocation7]
    $region13: #{linear_forward.1} parent=1 // pred_fallthru
      _
    // Predicated region
    $region14: #{linear_forward.1} parent=1 // pred_check
      _
    $region15: #{linear_forward.1} parent=1 // pred_check_branch
      %42 = sbr.rel (0) target = $region17
    $region16: #{linear_forward.1} parent=1 // pred_region
      %43 = dma.done [#allocation3], 128
    $region17: #{linear_forward.1} parent=1 // pred_fallthru
      _
    // Predicated region
    $region18: #{linear_forward.1} parent=1 // pred_check
      _
    $region19: #{linear_forward.1} parent=1 // pred_check_branch
      %45 = sbr.rel (0) target = $region21
    $region20: #{linear_forward.1} parent=1 // pred_region
      %46 = dma.done [#allocation4], 16
    $region21: #{linear_forward.1} parent=1 // pred_fallthru
      _
    // Predicated region
    $region22: #{linear_forward.1} parent=1 // pred_check
      _
    $region23: #{linear_forward.1} parent=1 // pred_check_branch
      %48 = sbr.rel (0) target = $region25
    $region24: #{linear_forward.1} parent=1 // pred_region
      %49 = dma.done [#allocation7], 16
    $region25: #{linear_forward.1} parent=1 // pred_fallthru
      _
    %50 = sfence
    %v51 = vld [vmem:[#allocation2] sm:$0xff]
    %s52 = sld [smem:[#allocation5]]
    %v53 = vstv %s52
    %v54 = vmul.f32 %v51, %v53
    %s55 = sld [smem:[#allocation5 + $0x1]]
    %v56 = vstv %s55
    %v57 = vmul.f32 %v51, %v56
    %59 = vrot.lane.b32.xlu0 %v57, 127
    %v60 = vpop.permute.xlu0 %59
    %v62 = vadd.f32 %v54, %v60
    %s63 = sld [smem:[#allocation5 + $0x2]]
    %v64 = vstv %s63
    %v65 = vmul.f32 %v51, %v64
    %67 = vrot.lane.b32.xlu0 %v65, 126
    %v68 = vpop.permute.xlu0 %67
    %v70 = vadd.f32 %v62, %v68
    %s71 = sld [smem:[#allocation5 + $0x3]]
    %v72 = vstv %s71
    %v73 = vmul.f32 %v51, %v72
    %75 = vrot.lane.b32.xlu0 %v73, 125
    %v76 = vpop.permute.xlu0 %75
    %v78 = vadd.f32 %v70, %v76
    %s79 = sld [smem:[#allocation5 + $0x4]]
    %v80 = vstv %s79
    %v81 = vmul.f32 %v51, %v80
    %83 = vrot.lane.b32.xlu0 %v81, 124
    %v84 = vpop.permute.xlu0 %83
    %v86 = vadd.f32 %v78, %v84
    %s87 = sld [smem:[#allocation6]]
    %v88 = vstv %s87
    %v89 = vadd.f32 %v86, %v88
    %s90 = sld [smem:[#allocation5 + $0x5]]
    %v91 = vstv %s90
    %v92 = vmul.f32 %v51, %v91
    %s93 = sld [smem:[#allocation5 + $0x6]]
    %v94 = vstv %s93
    %v95 = vmul.f32 %v51, %v94
    %97 = vrot.lane.b32.xlu0 %v95, 127
    %v98 = vpop.permute.xlu0 %97
    %v100 = vadd.f32 %v92, %v98
    %s101 = sld [smem:[#allocation5 + $0x7]]
    %v102 = vstv %s101
    %v103 = vmul.f32 %v51, %v102
    %105 = vrot.lane.b32.xlu0 %v103, 126
    %v106 = vpop.permute.xlu0 %105
    %v108 = vadd.f32 %v100, %v106
    %s109 = sld [smem:[#allocation5 + $0x8]]
    %v110 = vstv %s109
    %v111 = vmul.f32 %v51, %v110
    %113 = vrot.lane.b32.xlu0 %v111, 125
    %v114 = vpop.permute.xlu0 %113
    %v116 = vadd.f32 %v108, %v114
    %s117 = sld [smem:[#allocation5 + $0x9]]
    %v118 = vstv %s117
    %v119 = vmul.f32 %v51, %v118
    %121 = vrot.lane.b32.xlu0 %v119, 124
    %v122 = vpop.permute.xlu0 %121
    %v124 = vadd.f32 %v116, %v122
    %s125 = sld [smem:[#allocation6 + $0x1]]
    %v126 = vstv %s125
    %v127 = vadd.f32 %v124, %v126
    %129 = vrot.lane.b32.xlu0 %v127, 1
    %v130 = vpop.permute.xlu0 %129
    %vm132 = vcmask 7168
    %v133 = vsel %vm132, %v89, %v130
    %vm134 = vcmask 15360
    %135 = vst.msk [vmem:[%s3] sm:$0xff] %vm134, %v133
    // Predicated region
    $region26: #{linear_forward.1} parent=1 // pred_check
      _
    $region27: #{linear_forward.1} parent=1 // pred_check_branch
      %137 = sbr.rel (0) target = $region29
    $region28: #{linear_forward.1} parent=1 // pred_region
      _
    $region29: #{linear_forward.1} parent=1 // pred_fallthru
      _
    // Predicated region
    $region30: #{linear_forward.1} parent=1 // pred_check
      _
    $region31: #{linear_forward.1} parent=1 // pred_check_branch
      %139 = sbr.rel (0) target = $region33
    $region32: #{linear_forward.1} parent=1 // pred_region
      _
    $region33: #{linear_forward.1} parent=1 // pred_fallthru
      _
    %140 = vsyncpa [#allocation3], 1
    %141 = vsyncpa [#allocation4], 1
    %142 = vsyncpa [#allocation7], 1

</llo_original>
